<compile_context>
chip_gen: v7x
topology: tpu7x:2x2x1
jax: 0.10.0
libtpu: 0.0.40
codegen_flags: <defaults>
</compile_context>

<pallas_src>
import functools

import jax
import jax.numpy as jnp
from jax.experimental import pallas as pl
from jax.experimental.pallas import tpu as pltpu

NUM_ITERATIONS = 1  # matches `num_iterations = 1` in the reference script


def _interaction_kernel(x0_ref, hf_ref, hb_ref,
                        w1_ref, b1_ref, w23_ref, b23_ref, w4_ref, b4_ref,
                        x_out_ref, hf_out_ref, hb_out_ref,
                        *, units, num_iterations):
    U = units
    B = x0_ref.shape[0]

    x0 = x0_ref[...]
    hf = hf_ref[...]
    hb = hb_ref[...]

    # Weights already transposed to (in, out) and dense2/dense3 fused into a
    # block-diagonal (2U, 2U) matrix at init time.
    w1t = w1_ref[...]      # (U, U)   = dense1.weight.T
    w23t = w23_ref[...]    # (2U, 2U) = blockdiag(dense2.weight.T, dense3.weight.T)
    w4t = w4_ref[...]      # (U, U)   = dense4.weight.T

    # Hoisted bias broadcasts (JAX does not CSE broadcast_in_dim; do it once,
    # outside the iteration loop).
    b1b = jnp.broadcast_to(b1_ref[...], (B, U))
    b23b = jnp.broadcast_to(b23_ref[...], (B, 2 * U))
    b4b = jnp.broadcast_to(b4_ref[...], (B, U))

    for _ in range(num_iterations):
        # Stage 1: x1 = sigmoid(dense1(x0 + hf))
        x1 = jax.nn.sigmoid(
            jnp.dot(x0 + hf, w1t, preferred_element_type=jnp.float32) + b1b)

        # Stage 2: dense2 and dense3 are independent -> one fused MXU push.
        #   lanes 0:U   of `a` = hb + x1   (dense2 operand)
        #   lanes U:2U  of `a` = x1 + hf   (dense3 operand)
        # Block-diagonal weight keeps the two halves independent:
        #   m[:, :U]  = (hb + x1) @ W2^T + b2
        #   m[:, U:]  = (x1 + hf) @ W3^T + b3
        a = jnp.concatenate([hb + x1, x1 + hf], axis=-1)                   # (B, 2U)
        m = jnp.dot(a, w23t, preferred_element_type=jnp.float32) + b23b    # (B, 2U)
        hb2 = jax.nn.sigmoid(m[:, 0:U])
        hf2 = jax.nn.sigmoid(m[:, U:2 * U])

        # Stage 3: x2 = sigmoid(dense4(hb2 + x1))
        x2 = jax.nn.sigmoid(
            jnp.dot(hb2 + x1, w4t, preferred_element_type=jnp.float32) + b4b)

        x0, hf, hb = x2, hf2, hb2

    x_out_ref[...] = x0
    hf_out_ref[...] = hf
    hb_out_ref[...] = hb


def prepare_params(params):
    """One-time glue (call at init, NOT per forward): transpose weights to
    (in, out), fuse dense2/dense3 into a block-diagonal weight + concatenated
    bias, and reshape biases to (1, U) rows."""
    f32 = jnp.float32
    U = params["w1"].shape[0]
    w2t = jnp.transpose(params["w2"].astype(f32))   # (U, U)
    w3t = jnp.transpose(params["w3"].astype(f32))   # (U, U)
    zeros = jnp.zeros((U, U), dtype=f32)
    w23t = jnp.concatenate(
        [jnp.concatenate([w2t, zeros], axis=1),
         jnp.concatenate([zeros, w3t], axis=1)], axis=0)                 # (2U, 2U)
    return {
        "w1t": jnp.transpose(params["w1"].astype(f32)),
        "w23t": w23t,
        "w4t": jnp.transpose(params["w4"].astype(f32)),
        "b1": params["b1"].astype(f32).reshape(1, U),
        "b23": jnp.concatenate([params["b2"].astype(f32),
                                params["b3"].astype(f32)]).reshape(1, 2 * U),
        "b4": params["b4"].astype(f32).reshape(1, U),
    }


def interaction_module(inputs, forward_hidden_state, backward_hidden_state,
                       prepared, num_iterations=NUM_ITERATIONS):
    """Pallas implementation of InteractionModule.forward.

    inputs / forward_hidden_state / backward_hidden_state: (B, units) float32.
    prepared: output of prepare_params() (weights pre-transposed/fused once).
    Returns (x0, hf, hb), each (B, units) float32.
    """
    B, U = inputs.shape
    f32 = jnp.float32

    def vmem():
        return pl.BlockSpec(memory_space=pltpu.MemorySpace.VMEM)

    kernel = functools.partial(_interaction_kernel, units=U,
                               num_iterations=num_iterations)

    out_shape = (jax.ShapeDtypeStruct((B, U), f32),
                 jax.ShapeDtypeStruct((B, U), f32),
                 jax.ShapeDtypeStruct((B, U), f32))

    # Gridless: single invocation, everything resident in VMEM.
    x_out, hf_out, hb_out = pl.pallas_call(
        kernel,
        out_shape=out_shape,
        in_specs=[vmem() for _ in range(9)],
        out_specs=(vmem(), vmem(), vmem()),
    )(inputs.astype(f32),
      forward_hidden_state.astype(f32),
      backward_hidden_state.astype(f32),
      prepared["w1t"], prepared["b1"],
      prepared["w23t"], prepared["b23"],
      prepared["w4t"], prepared["b4"])

    return x_out, hf_out, hb_out


def _xavier_normal(key, out_features, in_features):
    # Matches torch.nn.init.xavier_normal_ for a Linear weight (out, in).
    std = (2.0 / (in_features + out_features)) ** 0.5
    return std * jax.random.normal(key, (out_features, in_features), dtype=jnp.float32)


def init_params(key, units):
    keys = jax.random.split(key, 4)
    params = {}
    for i in range(4):
        params[f"w{i + 1}"] = _xavier_normal(keys[i], units, units)
        # Deterministic zero biases (the reference only zeros dense1.bias; we use
        # zeros everywhere for a deterministic synthetic self-test).
        params[f"b{i + 1}"] = jnp.zeros((units,), dtype=jnp.float32)
    return params


def _reference(inputs, hf, hb, params, num_iterations):
    # Pure-JAX reference of the PyTorch forward for a sanity check.
    x0, hf0, hb0 = inputs, hf, hb

    def dense(v, w, b):
        return v @ w.T + b

    for _ in range(num_iterations):
        x1 = jax.nn.sigmoid(dense(x0 + hf0, params["w1"], params["b1"]))
        hb2 = jax.nn.sigmoid(dense(hb0 + x1, params["w2"], params["b2"]))
        hf2 = jax.nn.sigmoid(dense(x1 + hf0, params["w3"], params["b3"]))
        x2 = jax.nn.sigmoid(dense(hb2 + x1, params["w4"], params["b4"]))
        x0, hf0, hb0 = x2, hf2, hb2
    return x0, hf0, hb0


if __name__ == "__main__":
    key = jax.random.PRNGKey(0)
    k_in, k_hf, k_hb, k_par = jax.random.split(key, 4)

    batch = 8
    units = 32

    inputs = jax.random.normal(k_in, (batch, units), dtype=jnp.float32)
    hf = jax.random.normal(k_hf, (batch, units), dtype=jnp.float32)
    hb = jax.random.normal(k_hb, (batch, units), dtype=jnp.float32)

    params = init_params(k_par, units)
    prepared = prepare_params(params)   # one-time weight prep (no per-call transpose)

    x_out, hf_out, hb_out = interaction_module(inputs, hf, hb, prepared)
    jax.block_until_ready((x_out, hf_out, hb_out))

    x_ref, hf_ref, hb_ref = _reference(inputs, hf, hb, params, NUM_ITERATIONS)
    assert jnp.allclose(x_out, x_ref, atol=1e-5)
    assert jnp.allclose(hf_out, hf_ref, atol=1e-5)
    assert jnp.allclose(hb_out, hb_ref, atol=1e-5)

    print("KERNEL_OK")
</pallas_src>

<mosaic_0001>
module attributes {stable_mosaic.version = 11 : i64} {
  func.func @_interaction_kernel(%arg0: memref<8x32xf32, #tpu.memory_space<vmem>>, %arg1: memref<8x32xf32, #tpu.memory_space<vmem>>, %arg2: memref<8x32xf32, #tpu.memory_space<vmem>>, %arg3: memref<32x32xf32, #tpu.memory_space<vmem>>, %arg4: memref<1x32xf32, #tpu.memory_space<vmem>>, %arg5: memref<64x64xf32, #tpu.memory_space<vmem>>, %arg6: memref<1x64xf32, #tpu.memory_space<vmem>>, %arg7: memref<32x32xf32, #tpu.memory_space<vmem>>, %arg8: memref<1x32xf32, #tpu.memory_space<vmem>>, %arg9: memref<8x32xf32, #tpu.memory_space<vmem>>, %arg10: memref<8x32xf32, #tpu.memory_space<vmem>>, %arg11: memref<8x32xf32, #tpu.memory_space<vmem>>) attributes {dimension_semantics = [], scalar_prefetch = 0 : i64, scratch_operands = 0 : i64, tpu.core_type = #tpu.core_type<tc>} {
    %c0 = arith.constant 0 : index
    %c0_0 = arith.constant 0 : index
    %0 = vector.load %arg0[%c0, %c0_0] : memref<8x32xf32, #tpu.memory_space<vmem>>, vector<8x32xf32>
    %c0_1 = arith.constant 0 : index
    %c0_2 = arith.constant 0 : index
    %1 = vector.load %arg1[%c0_1, %c0_2] : memref<8x32xf32, #tpu.memory_space<vmem>>, vector<8x32xf32>
    %c0_3 = arith.constant 0 : index
    %c0_4 = arith.constant 0 : index
    %2 = vector.load %arg2[%c0_3, %c0_4] : memref<8x32xf32, #tpu.memory_space<vmem>>, vector<8x32xf32>
    %c0_5 = arith.constant 0 : index
    %c0_6 = arith.constant 0 : index
    %3 = vector.load %arg3[%c0_5, %c0_6] : memref<32x32xf32, #tpu.memory_space<vmem>>, vector<32x32xf32>
    %c0_7 = arith.constant 0 : index
    %c0_8 = arith.constant 0 : index
    %4 = vector.load %arg5[%c0_7, %c0_8] : memref<64x64xf32, #tpu.memory_space<vmem>>, vector<64x64xf32>
    %c0_9 = arith.constant 0 : index
    %c0_10 = arith.constant 0 : index
    %5 = vector.load %arg7[%c0_9, %c0_10] : memref<32x32xf32, #tpu.memory_space<vmem>>, vector<32x32xf32>
    %c0_11 = arith.constant 0 : index
    %c0_12 = arith.constant 0 : index
    %6 = vector.load %arg4[%c0_11, %c0_12] : memref<1x32xf32, #tpu.memory_space<vmem>>, vector<1x32xf32>
    %7 = vector.shape_cast %6 : vector<1x32xf32> to vector<1x32xf32>
    %8 = vector.broadcast %7 : vector<1x32xf32> to vector<8x32xf32>
    %c0_13 = arith.constant 0 : index
    %c0_14 = arith.constant 0 : index
    %9 = vector.load %arg6[%c0_13, %c0_14] : memref<1x64xf32, #tpu.memory_space<vmem>>, vector<1x64xf32>
    %10 = vector.shape_cast %9 : vector<1x64xf32> to vector<1x64xf32>
    %11 = vector.broadcast %10 : vector<1x64xf32> to vector<8x64xf32>
    %c0_15 = arith.constant 0 : index
    %c0_16 = arith.constant 0 : index
    %12 = vector.load %arg8[%c0_15, %c0_16] : memref<1x32xf32, #tpu.memory_space<vmem>>, vector<1x32xf32>
    %13 = vector.shape_cast %12 : vector<1x32xf32> to vector<1x32xf32>
    %14 = vector.broadcast %13 : vector<1x32xf32> to vector<8x32xf32>
    %15 = arith.addf %0, %1 : vector<8x32xf32>
    %cst = arith.constant dense<0.000000e+00> : vector<8x32xf32>
    %16 = tpu.matmul %15, %3, %cst {dimension_numbers = #tpu.dot_dimension_numbers<[1], [0], [0], [1], [0, 0, 1, 1], [], []>} : vector<8x32xf32>, vector<32x32xf32>, vector<8x32xf32> -> vector<8x32xf32>
    %17 = arith.addf %16, %8 : vector<8x32xf32>
    %18 = arith.negf %17 : vector<8x32xf32>
    %19 = math.exp %18 : vector<8x32xf32>
    %cst_17 = arith.constant 1.000000e+00 : f32
    %20 = vector.broadcast %cst_17 : f32 to vector<8x32xf32>
    %21 = arith.addf %20, %19 : vector<8x32xf32>
    %22 = arith.divf %20, %21 : vector<8x32xf32>
    %23 = arith.addf %2, %22 : vector<8x32xf32>
    %24 = arith.addf %22, %1 : vector<8x32xf32>
    %25 = tpu.concatenate %23, %24 in 1 : vector<8x32xf32>, vector<8x32xf32> -> vector<8x64xf32>
    %cst_18 = arith.constant dense<0.000000e+00> : vector<8x64xf32>
    %26 = tpu.matmul %25, %4, %cst_18 {dimension_numbers = #tpu.dot_dimension_numbers<[1], [0], [0], [1], [0, 0, 1, 1], [], []>} : vector<8x64xf32>, vector<64x64xf32>, vector<8x64xf32> -> vector<8x64xf32>
    %27 = arith.addf %26, %11 : vector<8x64xf32>
    %28 = vector.extract_strided_slice %27 {offsets = [0, 0], sizes = [8, 32], strides = [1, 1]} : vector<8x64xf32> to vector<8x32xf32>
    %29 = arith.negf %28 : vector<8x32xf32>
    %30 = math.exp %29 : vector<8x32xf32>
    %cst_19 = arith.constant 1.000000e+00 : f32
    %31 = vector.broadcast %cst_19 : f32 to vector<8x32xf32>
    %32 = arith.addf %31, %30 : vector<8x32xf32>
    %33 = arith.divf %31, %32 : vector<8x32xf32>
    %34 = vector.extract_strided_slice %27 {offsets = [0, 32], sizes = [8, 32], strides = [1, 1]} : vector<8x64xf32> to vector<8x32xf32>
    %35 = arith.negf %34 : vector<8x32xf32>
    %36 = math.exp %35 : vector<8x32xf32>
    %cst_20 = arith.constant 1.000000e+00 : f32
    %37 = vector.broadcast %cst_20 : f32 to vector<8x32xf32>
    %38 = arith.addf %37, %36 : vector<8x32xf32>
    %39 = arith.divf %37, %38 : vector<8x32xf32>
    %40 = arith.addf %33, %22 : vector<8x32xf32>
    %cst_21 = arith.constant dense<0.000000e+00> : vector<8x32xf32>
    %41 = tpu.matmul %40, %5, %cst_21 {dimension_numbers = #tpu.dot_dimension_numbers<[1], [0], [0], [1], [0, 0, 1, 1], [], []>} : vector<8x32xf32>, vector<32x32xf32>, vector<8x32xf32> -> vector<8x32xf32>
    %42 = arith.addf %41, %14 : vector<8x32xf32>
    %43 = arith.negf %42 : vector<8x32xf32>
    %44 = math.exp %43 : vector<8x32xf32>
    %cst_22 = arith.constant 1.000000e+00 : f32
    %45 = vector.broadcast %cst_22 : f32 to vector<8x32xf32>
    %46 = arith.addf %45, %44 : vector<8x32xf32>
    %47 = arith.divf %45, %46 : vector<8x32xf32>
    %c0_23 = arith.constant 0 : index
    %c0_24 = arith.constant 0 : index
    %48 = vector.load %arg9[%c0_23, %c0_24] : memref<8x32xf32, #tpu.memory_space<vmem>>, vector<8x32xf32>
    tpu.vector_store %arg9[%c0_23, %c0_24], %47 {strides = array<i32>} : memref<8x32xf32, #tpu.memory_space<vmem>>, vector<8x32xf32>,
    %c0_25 = arith.constant 0 : index
    %c0_26 = arith.constant 0 : index
    %49 = vector.load %arg10[%c0_25, %c0_26] : memref<8x32xf32, #tpu.memory_space<vmem>>, vector<8x32xf32>
    tpu.vector_store %arg10[%c0_25, %c0_26], %39 {strides = array<i32>} : memref<8x32xf32, #tpu.memory_space<vmem>>, vector<8x32xf32>,
    %c0_27 = arith.constant 0 : index
    %c0_28 = arith.constant 0 : index
    %50 = vector.load %arg11[%c0_27, %c0_28] : memref<8x32xf32, #tpu.memory_space<vmem>>, vector<8x32xf32>
    tpu.vector_store %arg11[%c0_27, %c0_28], %33 {strides = array<i32>} : memref<8x32xf32, #tpu.memory_space<vmem>>, vector<8x32xf32>,
    return
  }
}

</mosaic_0001>

<llo_original>
// kernel: tpu_custom_call.1
$region0: #{tpu_custom_call.1}
  #allocation0 [shape = 'u32[]', space=smem, size = 0x4, offset = 0x4, fixed_abs, tag = 'smem constant byte address 0x4 - core index']
  #allocation1 [shape = 'u32[144,128]{1,0:T(1,128)}', space=vmem, size = 0x12000, scoped, tag = 'internal scratch']
  %s0 = inlined_call_operand.hbm [shape: f32[8,32], index: 0, kind: input, shape index: {}]
  %s1 = inlined_call_operand.hbm [shape: f32[8,32], index: 1, kind: input, shape index: {}]
  %s2 = inlined_call_operand.hbm [shape: f32[8,32], index: 2, kind: input, shape index: {}]
  %s3 = inlined_call_operand.hbm [shape: f32[32,32], index: 3, kind: input, shape index: {}]
  %s4 = inlined_call_operand.vmem [shape: f32[1,32], index: 4, kind: input, shape index: {}]
  %s5 = inlined_call_operand.hbm [shape: f32[64,64], index: 5, kind: input, shape index: {}]
  %s6 = inlined_call_operand.vmem [shape: f32[1,64], index: 6, kind: input, shape index: {}]
  %s7 = inlined_call_operand.hbm [shape: f32[32,32], index: 7, kind: input, shape index: {}]
  %s8 = inlined_call_operand.vmem [shape: f32[1,32], index: 8, kind: input, shape index: {}]
  %s9 = inlined_call_operand.hbm [shape: f32[8,32], index: 9, kind: output, shape index: {0}]
  %s10 = inlined_call_operand.hbm [shape: f32[8,32], index: 10, kind: output, shape index: {1}]
  %s11 = inlined_call_operand.hbm [shape: f32[8,32], index: 11, kind: output, shape index: {2}]
  %12 = xla_tuple %s9, %s10, %s11
  %s13 = sld [smem:[#allocation0]]
  $region86: #{tpu_custom_call.1} parent=0
    _
  %s15 = ssub.s32 1, %s13
  %s16 = scalar_select 0, %s15, %s13
  $region1: #{tpu_custom_call.1} parent=0
    #allocation2 [shape = 'u8[4096]{0}', space=vmem, size = 0x1000, scoped, tag = 'input window, operand 0, single buffered']
    #allocation3 [shape = 's32[1]{0}', space=sflag, size = 0x4, scoped, tag = 'scoped memory for tpu_custom_call.1']
    #allocation4 [shape = 's32[1]{0}', space=sflag, size = 0x4, scoped, tag = 'scoped memory for tpu_custom_call.1']
    #allocation5 [shape = 'u8[4096]{0}', space=vmem, size = 0x1000, scoped, tag = 'input window, operand 1, single buffered']
    #allocation6 [shape = 's32[1]{0}', space=sflag, size = 0x4, scoped, tag = 'scoped memory for tpu_custom_call.1']
    #allocation7 [shape = 'u8[4096]{0}', space=vmem, size = 0x1000, scoped, tag = 'input window, operand 2, single buffered']
    #allocation8 [shape = 'u8[16384]{0}', space=vmem, size = 0x4000, scoped, tag = 'input window, operand 3, single buffered']
    #allocation9 [shape = 's32[1]{0}', space=sflag, size = 0x4, scoped, tag = 'scoped memory for tpu_custom_call.1']
    #allocation10 [shape = 'u8[32768]{0}', space=vmem, size = 0x8000, scoped, tag = 'input window, operand 5, single buffered']
    #allocation11 [shape = 'u8[16384]{0}', space=vmem, size = 0x4000, scoped, tag = 'input window, operand 7, single buffered']
    #allocation12 [shape = 's32[1]{0}', space=sflag, size = 0x4, scoped, tag = 'scoped memory for tpu_custom_call.1']
    #allocation13 [shape = 'u8[4096]{0}', space=vmem, size = 0x1000, scoped, tag = 'output window, operand 0, single buffered']
    #allocation14 [shape = 'u8[4096]{0}', space=vmem, size = 0x1000, scoped, tag = 'output window, operand 1, single buffered']
    #allocation15 [shape = 's32[1]{0}', space=sflag, size = 0x4, scoped, tag = 'scoped memory for tpu_custom_call.1']
    #allocation16 [shape = 'u8[4096]{0}', space=vmem, size = 0x1000, scoped, tag = 'output window, operand 2, single buffered']
    %17 = vsyncpa [#allocation3], 0
    %18 = vsyncpa [#allocation6], 0
    %19 = vsyncpa [#allocation9], 0
    %20 = vsyncpa [#allocation12], 0
    %21 = vsyncpa [#allocation4], 0
    %22 = vsyncpa [#allocation15], 0
    // Predicated region
    $region2: #{tpu_custom_call.1} parent=1 // pred_check
      _
    $region3: #{tpu_custom_call.1} parent=1 // pred_check_branch
      %24 = sbr.rel (0) target = $region5
    $region4: #{tpu_custom_call.1} parent=1 // pred_region
      %s26 = ssub.s32 128, 128
      %27 = vsyncadd [#allocation3], %s26
      %s29 = sshll.u32 [#allocation2], 4
      %s30 = int_to_ptr.vmem [resolvable:$true] %s29
      %32 = dma.hbm_to_vmem [thread:$0]  %s0, 128, %s30, [#allocation3]
    $region5: #{tpu_custom_call.1} parent=1 // pred_fallthru
      _
    // Predicated region
    $region6: #{tpu_custom_call.1} parent=1 // pred_check
      _
    $region7: #{tpu_custom_call.1} parent=1 // pred_check_branch
      %34 = sbr.rel (0) target = $region9
    $region8: #{tpu_custom_call.1} parent=1 // pred_region
      %s36 = ssub.s32 128, 128
      %37 = vsyncadd [#allocation6], %s36
      %s39 = sshll.u32 [#allocation5], 4
      %s40 = int_to_ptr.vmem [resolvable:$true] %s39
      %42 = dma.hbm_to_vmem [thread:$0]  %s1, 128, %s40, [#allocation6]
    $region9: #{tpu_custom_call.1} parent=1 // pred_fallthru
      _
    // Predicated region
    $region10: #{tpu_custom_call.1} parent=1 // pred_check
      _
    $region11: #{tpu_custom_call.1} parent=1 // pred_check_branch
      %44 = sbr.rel (0) target = $region13
    $region12: #{tpu_custom_call.1} parent=1 // pred_region
      %s46 = ssub.s32 128, 128
      %47 = vsyncadd [#allocation6], %s46
      %s49 = sshll.u32 [#allocation7], 4
      %s50 = int_to_ptr.vmem [resolvable:$true] %s49
      %52 = dma.hbm_to_vmem [thread:$0]  %s2, 128, %s50, [#allocation6]
    $region13: #{tpu_custom_call.1} parent=1 // pred_fallthru
      _
    // Predicated region
    $region14: #{tpu_custom_call.1} parent=1 // pred_check
      _
    $region15: #{tpu_custom_call.1} parent=1 // pred_check_branch
      %54 = sbr.rel (0) target = $region17
    $region16: #{tpu_custom_call.1} parent=1 // pred_region
      %s56 = ssub.s32 512, 512
      %57 = vsyncadd [#allocation9], %s56
      %s58 = sshll.u32 [#allocation8], 4
      %s59 = int_to_ptr.vmem [resolvable:$true] %s58
      %64 = dma.hbm_to_vmem [thread:$0]  %s3, 512, %s59, [#allocation9], 128, 128, 8
    $region17: #{tpu_custom_call.1} parent=1 // pred_fallthru
      _
    // Predicated region
    $region18: #{tpu_custom_call.1} parent=1 // pred_check
      _
    $region19: #{tpu_custom_call.1} parent=1 // pred_check_branch
      %66 = sbr.rel (0) target = $region21
    $region20: #{tpu_custom_call.1} parent=1 // pred_region
      _
    $region21: #{tpu_custom_call.1} parent=1 // pred_fallthru
      _
    // Predicated region
    $region22: #{tpu_custom_call.1} parent=1 // pred_check
      _
    $region23: #{tpu_custom_call.1} parent=1 // pred_check_branch
      %68 = sbr.rel (0) target = $region25
    $region24: #{tpu_custom_call.1} parent=1 // pred_region
      %s70 = ssub.s32 1024, 1024
      %71 = vsyncadd [#allocation9], %s70
      %s72 = sshll.u32 [#allocation10], 4
      %s73 = int_to_ptr.vmem [resolvable:$true] %s72
      %78 = dma.hbm_to_vmem [thread:$0]  %s5, 1024, %s73, [#allocation9], 128, 128, 8
    $region25: #{tpu_custom_call.1} parent=1 // pred_fallthru
      _
    // Predicated region
    $region26: #{tpu_custom_call.1} parent=1 // pred_check
      _
    $region27: #{tpu_custom_call.1} parent=1 // pred_check_branch
      %80 = sbr.rel (0) target = $region29
    $region28: #{tpu_custom_call.1} parent=1 // pred_region
      _
    $region29: #{tpu_custom_call.1} parent=1 // pred_fallthru
      _
    // Predicated region
    $region30: #{tpu_custom_call.1} parent=1 // pred_check
      _
    $region31: #{tpu_custom_call.1} parent=1 // pred_check_branch
      %82 = sbr.rel (0) target = $region33
    $region32: #{tpu_custom_call.1} parent=1 // pred_region
      %s84 = ssub.s32 512, 512
      %85 = vsyncadd [#allocation12], %s84
      %s86 = sshll.u32 [#allocation11], 4
      %s87 = int_to_ptr.vmem [resolvable:$true] %s86
      %92 = dma.hbm_to_vmem [thread:$0]  %s7, 512, %s87, [#allocation12], 128, 128, 8
    $region33: #{tpu_custom_call.1} parent=1 // pred_fallthru
      _
    // Predicated region
    $region34: #{tpu_custom_call.1} parent=1 // pred_check
      _
    $region35: #{tpu_custom_call.1} parent=1 // pred_check_branch
      %94 = sbr.rel (0) target = $region37
    $region36: #{tpu_custom_call.1} parent=1 // pred_region
      _
    $region37: #{tpu_custom_call.1} parent=1 // pred_fallthru
      _
    // Predicated region
    $region38: #{tpu_custom_call.1} parent=1 // pred_check
      _
    $region39: #{tpu_custom_call.1} parent=1 // pred_check_branch
      %96 = sbr.rel (0) target = $region41
    $region40: #{tpu_custom_call.1} parent=1 // pred_region
      %97 = dma.done [#allocation3], 128
    $region41: #{tpu_custom_call.1} parent=1 // pred_fallthru
      _
    // Predicated region
    $region42: #{tpu_custom_call.1} parent=1 // pred_check
      _
    $region43: #{tpu_custom_call.1} parent=1 // pred_check_branch
      %99 = sbr.rel (0) target = $region45
    $region44: #{tpu_custom_call.1} parent=1 // pred_region
      %100 = dma.done [#allocation6], 128
    $region45: #{tpu_custom_call.1} parent=1 // pred_fallthru
      _
    // Predicated region
    $region46: #{tpu_custom_call.1} parent=1 // pred_check
      _
    $region47: #{tpu_custom_call.1} parent=1 // pred_check_branch
      %102 = sbr.rel (0) target = $region49
    $region48: #{tpu_custom_call.1} parent=1 // pred_region
      %103 = dma.done [#allocation6], 128
    $region49: #{tpu_custom_call.1} parent=1 // pred_fallthru
      _
    // Predicated region
    $region50: #{tpu_custom_call.1} parent=1 // pred_check
      _
    $region51: #{tpu_custom_call.1} parent=1 // pred_check_branch
      %105 = sbr.rel (0) target = $region53
    $region52: #{tpu_custom_call.1} parent=1 // pred_region
      %106 = dma.done [#allocation9], 512
    $region53: #{tpu_custom_call.1} parent=1 // pred_fallthru
      _
    // Predicated region
    $region54: #{tpu_custom_call.1} parent=1 // pred_check
      _
    $region55: #{tpu_custom_call.1} parent=1 // pred_check_branch
      %108 = sbr.rel (0) target = $region57
    $region56: #{tpu_custom_call.1} parent=1 // pred_region
      %109 = dma.done [#allocation9], 1024
    $region57: #{tpu_custom_call.1} parent=1 // pred_fallthru
      _
    // Predicated region
    $region58: #{tpu_custom_call.1} parent=1 // pred_check
      _
    $region59: #{tpu_custom_call.1} parent=1 // pred_check_branch
      %111 = sbr.rel (0) target = $region61
    $region60: #{tpu_custom_call.1} parent=1 // pred_region
      %112 = dma.done [#allocation12], 512
    $region61: #{tpu_custom_call.1} parent=1 // pred_fallthru
      _
    %v113 = vld [vmem:[#allocation2] sm:$0xff]
    %v114 = vld [vmem:[#allocation5] sm:$0xff]
    %v115 = vld [vmem:[#allocation7] sm:$0xff]
    %v116 = vld [vmem:[#allocation8] sm:$0xff]
    %v117 = vld [vmem:[#allocation8 + $0x8] sm:$0xff]
    %v118 = vld [vmem:[#allocation8 + $0x10] sm:$0xff]
    %v119 = vld [vmem:[#allocation8 + $0x18] sm:$0xff]
    %v120 = vld [vmem:[#allocation10] sm:$0xff]
    %v121 = vld [vmem:[#allocation10 + $0x8] sm:$0xff]
    %v122 = vld [vmem:[#allocation10 + $0x10] sm:$0xff]
    %v123 = vld [vmem:[#allocation10 + $0x18] sm:$0xff]
    %v124 = vld [vmem:[#allocation10 + $0x20] sm:$0xff]
    %v125 = vld [vmem:[#allocation10 + $0x28] sm:$0xff]
    %v126 = vld [vmem:[#allocation10 + $0x30] sm:$0xff]
    %v127 = vld [vmem:[#allocation10 + $0x38] sm:$0xff]
    %v128 = vld [vmem:[#allocation11] sm:$0xff]
    %v129 = vld [vmem:[#allocation11 + $0x8] sm:$0xff]
    %v130 = vld [vmem:[#allocation11 + $0x10] sm:$0xff]
    %v131 = vld [vmem:[#allocation11 + $0x18] sm:$0xff]
    %v132 = vld [vmem:[%s4] sm:$0x1]
    %v134 = vlaneseq
    %v135 = vshrl.u32 %v134, 7
    %v136 = vsub.s32 0, %v135
    %v137 = vrot.slane %v132, %v136
    %v139 = vld [vmem:[%s6] sm:$0x1]
    %v141 = vlaneseq
    %v142 = vshrl.u32 %v141, 7
    %v143 = vsub.s32 0, %v142
    %v144 = vrot.slane %v139, %v143
    %v146 = vld [vmem:[%s8] sm:$0x1]
    %v148 = vlaneseq
    %v149 = vshrl.u32 %v148, 7
    %v150 = vsub.s32 0, %v149
    %v151 = vrot.slane %v146, %v150
    %v153 = vadd.f32 %v113, %v114
    %vm154 = vcmask 261120
    %v156 = vsel %vm154, %v153, 0
    %158 = vmatprep.subr.mxu0 0.0
    %159 = vmatpush1.msra.mxu0 %v116
    %160 = vmatprep.subr.mxu0 0.0
    %161 = vmatpush1.msra.mxu0 %v117
    %162 = vmatprep.subr.mxu0 0.0
    %163 = vmatpush1.msra.mxu0 %v118
    %164 = vmatprep.subr.mxu0 0.0
    %165 = vmatpush1.msra.mxu0 %v119
    %166 = vmatprep.subr.mxu0 0.0
    %167 = vmatpush1.msra.mxu0 0.0
    %168 = vmatprep.subr.mxu0 0.0
    %169 = vmatpush1.msra.mxu0 0.0
    %170 = vmatprep.subr.mxu0 0.0
    %171 = vmatpush1.msra.mxu0 0.0
    %172 = vmatprep.subr.mxu0 0.0
    %173 = vmatpush1.msra.mxu0 0.0
    %174 = vmatprep.subr.mxu0 0.0
    %175 = vmatpush1.msra.mxu0 0.0
    %176 = vmatprep.subr.mxu0 0.0
    %177 = vmatpush1.msra.mxu0 0.0
    %178 = vmatprep.subr.mxu0 0.0
    %179 = vmatpush1.msra.mxu0 0.0
    %180 = vmatprep.subr.mxu0 0.0
    %181 = vmatpush1.msra.mxu0 0.0
    %182 = vmatprep.subr.mxu0 0.0
    %183 = vmatpush1.msra.mxu0 0.0
    %184 = vmatprep.subr.mxu0 0.0
    %185 = vmatpush1.msra.mxu0 0.0
    %186 = vmatprep.subr.mxu0 0.0
    %187 = vmatpush1.msra.mxu0 0.0
    %188 = vmatprep.subr.mxu0 0.0
    %189 = vmatpush1.msra.mxu0 0.0
    %190 = vmatprep.subr.mxu0 0.0
    %191 = vmatpush1.msra.mxu0 0.0
    %192 = vmatprep.subr.mxu0 0.0
    %193 = vmatpush1.msra.mxu0 0.0
    %194 = vmatprep.subr.mxu0 0.0
    %195 = vmatpush1.msra.mxu0 0.0
    %196 = vmatprep.subr.mxu0 0.0
    %197 = vmatpush1.msra.mxu0 0.0
    %198 = vmatprep.subr.mxu0 0.0
    %199 = vmatpush1.msra.mxu0 0.0
    %200 = vmatprep.subr.mxu0 0.0
    %201 = vmatpush1.msra.mxu0 0.0
    %202 = vmatprep.subr.mxu0 0.0
    %203 = vmatpush1.msra.mxu0 0.0
    %204 = vmatprep.subr.mxu0 0.0
    %205 = vmatpush1.msra.mxu0 0.0
    %206 = vmatprep.subr.mxu0 0.0
    %207 = vmatpush1.msra.mxu0 0.0
    %208 = vmatprep.subr.mxu0 0.0
    %209 = vmatpush1.msra.mxu0 0.0
    %210 = vmatprep.subr.mxu0 0.0
    %211 = vmatpush1.msra.mxu0 0.0
    %212 = vmatprep.subr.mxu0 0.0
    %213 = vmatpush1.msra.mxu0 0.0
    %214 = vmatprep.subr.mxu0 0.0
    %215 = vmatpush1.msra.mxu0 0.0
    %216 = vmatprep.subr.mxu0 0.0
    %217 = vmatpush1.msra.mxu0 0.0
    %218 = vmatprep.subr.mxu0 0.0
    %219 = vmatpush1.msra.mxu0 0.0
    %220 = vmatprep.subr.mxu0 0.0
    %221 = vmatpush1.msra.mxu0 0.0
    %222 = vmatprep.mubr.f32.mxu0 0.0
    %223 = vmatmul.mubr.f32.gmra.mrb[0].mxu0 %v156
    %v224 = vpop.f32.mrb[0].mxu0
    %v225 = vadd.f32 %v137, %v224
    %v226 = vpop.f32.mrb[0].mxu0
    %227 = vdwg.mxu0
    %v228 = vxor.u32 %v225, 2147483648
    %v229 = vmul.f32 %v228, 1.442695
    %v230 = vpow.pop %v229
    %v231 = vadd.f32 %v230, 1.0
    %v232 = vrcp.pop %v231
    %v233 = vmul.f32 1.0, %v232
    %v234 = vadd.f32 %v115, %v233
    %v235 = vadd.f32 %v233, %v114
    %237 = vrot.lane.b32.xlu0 %v235, 32
    %v238 = vpop.permute.xlu0 %237
    %v240 = vsel %vm154, %v234, %v238
    %vm241 = vcmask 523264
    %v243 = vsel %vm241, %v240, 0
    %245 = vmatprep.subr.mxu0 0.0
    %246 = vmatpush1.msra.mxu0 %v120
    %247 = vmatprep.subr.mxu0 0.0
    %248 = vmatpush1.msra.mxu0 %v121
    %249 = vmatprep.subr.mxu0 0.0
    %250 = vmatpush1.msra.mxu0 %v122
    %251 = vmatprep.subr.mxu0 0.0
    %252 = vmatpush1.msra.mxu0 %v123
    %253 = vmatprep.subr.mxu0 0.0
    %254 = vmatpush1.msra.mxu0 %v124
    %255 = vmatprep.subr.mxu0 0.0
    %256 = vmatpush1.msra.mxu0 %v125
    %257 = vmatprep.subr.mxu0 0.0
    %258 = vmatpush1.msra.mxu0 %v126
    %259 = vmatprep.subr.mxu0 0.0
    %260 = vmatpush1.msra.mxu0 %v127
    %261 = vmatprep.subr.mxu0 0.0
    %262 = vmatpush1.msra.mxu0 0.0
    %263 = vmatprep.subr.mxu0 0.0
    %264 = vmatpush1.msra.mxu0 0.0
    %265 = vmatprep.subr.mxu0 0.0
    %266 = vmatpush1.msra.mxu0 0.0
    %267 = vmatprep.subr.mxu0 0.0
    %268 = vmatpush1.msra.mxu0 0.0
    %269 = vmatprep.subr.mxu0 0.0
    %270 = vmatpush1.msra.mxu0 0.0
    %271 = vmatprep.subr.mxu0 0.0
    %272 = vmatpush1.msra.mxu0 0.0
    %273 = vmatprep.subr.mxu0 0.0
    %274 = vmatpush1.msra.mxu0 0.0
    %275 = vmatprep.subr.mxu0 0.0
    %276 = vmatpush1.msra.mxu0 0.0
    %277 = vmatprep.subr.mxu0 0.0
    %278 = vmatpush1.msra.mxu0 0.0
    %279 = vmatprep.subr.mxu0 0.0
    %280 = vmatpush1.msra.mxu0 0.0
    %281 = vmatprep.subr.mxu0 0.0
    %282 = vmatpush1.msra.mxu0 0.0
    %283 = vmatprep.subr.mxu0 0.0
    %284 = vmatpush1.msra.mxu0 0.0
    %285 = vmatprep.subr.mxu0 0.0
    %286 = vmatpush1.msra.mxu0 0.0
    %287 = vmatprep.subr.mxu0 0.0
    %288 = vmatpush1.msra.mxu0 0.0
    %289 = vmatprep.subr.mxu0 0.0
    %290 = vmatpush1.msra.mxu0 0.0
    %291 = vmatprep.subr.mxu0 0.0
    %292 = vmatpush1.msra.mxu0 0.0
    %293 = vmatprep.subr.mxu0 0.0
    %294 = vmatpush1.msra.mxu0 0.0
    %295 = vmatprep.subr.mxu0 0.0
    %296 = vmatpush1.msra.mxu0 0.0
    %297 = vmatprep.subr.mxu0 0.0
    %298 = vmatpush1.msra.mxu0 0.0
    %299 = vmatprep.subr.mxu0 0.0
    %300 = vmatpush1.msra.mxu0 0.0
    %301 = vmatprep.subr.mxu0 0.0
    %302 = vmatpush1.msra.mxu0 0.0
    %303 = vmatprep.subr.mxu0 0.0
    %304 = vmatpush1.msra.mxu0 0.0
    %305 = vmatprep.subr.mxu0 0.0
    %306 = vmatpush1.msra.mxu0 0.0
    %307 = vmatprep.subr.mxu0 0.0
    %308 = vmatpush1.msra.mxu0 0.0
    %309 = vmatprep.mubr.f32.mxu0 0.0
    %310 = vmatmul.mubr.f32.gmra.mrb[0].mxu0 %v243
    %v311 = vpop.f32.mrb[0].mxu0
    %v312 = vadd.f32 %v144, %v311
    %v313 = vpop.f32.mrb[0].mxu0
    %314 = vdwg.mxu0
    %v315 = vxor.u32 %v312, 2147483648
    %v316 = vmul.f32 %v315, 1.442695
    %v317 = vpow.pop %v316
    %v318 = vadd.f32 %v317, 1.0
    %v319 = vrcp.pop %v318
    %v320 = vmul.f32 1.0, %v319
    %v321 = vadd.f32 %v320, %v233
    %v323 = vsel %vm154, %v321, 0
    %325 = vmatprep.subr.mxu0 0.0
    %326 = vmatpush1.msra.mxu0 %v128
    %327 = vmatprep.subr.mxu0 0.0
    %328 = vmatpush1.msra.mxu0 %v129
    %329 = vmatprep.subr.mxu0 0.0
    %330 = vmatpush1.msra.mxu0 %v130
    %331 = vmatprep.subr.mxu0 0.0
    %332 = vmatpush1.msra.mxu0 %v131
    %333 = vmatprep.subr.mxu0 0.0
    %334 = vmatpush1.msra.mxu0 0.0
    %335 = vmatprep.subr.mxu0 0.0
    %336 = vmatpush1.msra.mxu0 0.0
    %337 = vmatprep.subr.mxu0 0.0
    %338 = vmatpush1.msra.mxu0 0.0
    %339 = vmatprep.subr.mxu0 0.0
    %340 = vmatpush1.msra.mxu0 0.0
    %341 = vmatprep.subr.mxu0 0.0
    %342 = vmatpush1.msra.mxu0 0.0
    %343 = vmatprep.subr.mxu0 0.0
    %344 = vmatpush1.msra.mxu0 0.0
    %345 = vmatprep.subr.mxu0 0.0
    %346 = vmatpush1.msra.mxu0 0.0
    %347 = vmatprep.subr.mxu0 0.0
    %348 = vmatpush1.msra.mxu0 0.0
    %349 = vmatprep.subr.mxu0 0.0
    %350 = vmatpush1.msra.mxu0 0.0
    %351 = vmatprep.subr.mxu0 0.0
    %352 = vmatpush1.msra.mxu0 0.0
    %353 = vmatprep.subr.mxu0 0.0
    %354 = vmatpush1.msra.mxu0 0.0
    %355 = vmatprep.subr.mxu0 0.0
    %356 = vmatpush1.msra.mxu0 0.0
    %357 = vmatprep.subr.mxu0 0.0
    %358 = vmatpush1.msra.mxu0 0.0
    %359 = vmatprep.subr.mxu0 0.0
    %360 = vmatpush1.msra.mxu0 0.0
    %361 = vmatprep.subr.mxu0 0.0
    %362 = vmatpush1.msra.mxu0 0.0
    %363 = vmatprep.subr.mxu0 0.0
    %364 = vmatpush1.msra.mxu0 0.0
    %365 = vmatprep.subr.mxu0 0.0
    %366 = vmatpush1.msra.mxu0 0.0
    %367 = vmatprep.subr.mxu0 0.0
    %368 = vmatpush1.msra.mxu0 0.0
    %369 = vmatprep.subr.mxu0 0.0
    %370 = vmatpush1.msra.mxu0 0.0
    %371 = vmatprep.subr.mxu0 0.0
    %372 = vmatpush1.msra.mxu0 0.0
    %373 = vmatprep.subr.mxu0 0.0
    %374 = vmatpush1.msra.mxu0 0.0
    %375 = vmatprep.subr.mxu0 0.0
    %376 = vmatpush1.msra.mxu0 0.0
    %377 = vmatprep.subr.mxu0 0.0
    %378 = vmatpush1.msra.mxu0 0.0
    %379 = vmatprep.subr.mxu0 0.0
    %380 = vmatpush1.msra.mxu0 0.0
    %381 = vmatprep.subr.mxu0 0.0
    %382 = vmatpush1.msra.mxu0 0.0
    %383 = vmatprep.subr.mxu0 0.0
    %384 = vmatpush1.msra.mxu0 0.0
    %385 = vmatprep.subr.mxu0 0.0
    %386 = vmatpush1.msra.mxu0 0.0
    %387 = vmatprep.subr.mxu0 0.0
    %388 = vmatpush1.msra.mxu0 0.0
    %389 = vmatprep.mubr.f32.mxu0 0.0
    %390 = vmatmul.mubr.f32.gmra.mrb[0].mxu0 %v323
    %v391 = vpop.f32.mrb[0].mxu0
    %v392 = vadd.f32 %v151, %v391
    %v393 = vpop.f32.mrb[0].mxu0
    %394 = vdwg.mxu0
    %v395 = vxor.u32 %v392, 2147483648
    %v396 = vmul.f32 %v395, 1.442695
    %v397 = vpow.pop %v396
    %v398 = vadd.f32 %v397, 1.0
    %v399 = vrcp.pop %v398
    %v400 = vmul.f32 1.0, %v399
    %401 = vst.msk [vmem:[#allocation13] sm:$0xff] %vm154, %v400
    %403 = vrot.lane.b32.xlu0 %v320, 96
    %v404 = vpop.permute.xlu0 %403
    %406 = vst.msk [vmem:[#allocation14] sm:$0xff] %vm154, %v404
    %407 = vst.msk [vmem:[#allocation16] sm:$0xff] %vm154, %v320
    // Predicated region
    $region62: #{tpu_custom_call.1} parent=1 // pred_check
      _
    $region63: #{tpu_custom_call.1} parent=1 // pred_check_branch
      %409 = sbr.rel (0) target = $region65
    $region64: #{tpu_custom_call.1} parent=1 // pred_region
      %s411 = ssub.s32 128, 128
      %412 = vsyncadd [#allocation4], %s411
      %s414 = sshll.u32 [#allocation13], 4
      %s415 = int_to_ptr.vmem [resolvable:$true] %s414
      %417 = dma.vmem_to_hbm [thread:$0]  %s415, 128, %s9, [#allocation4]
    $region65: #{tpu_custom_call.1} parent=1 // pred_fallthru
      _
    // Predicated region
    $region66: #{tpu_custom_call.1} parent=1 // pred_check
      _
    $region67: #{tpu_custom_call.1} parent=1 // pred_check_branch
      %419 = sbr.rel (0) target = $region69
    $region68: #{tpu_custom_call.1} parent=1 // pred_region
      %s421 = ssub.s32 128, 128
      %422 = vsyncadd [#allocation15], %s421
      %s424 = sshll.u32 [#allocation14], 4
      %s425 = int_to_ptr.vmem [resolvable:$true] %s424
      %427 = dma.vmem_to_hbm [thread:$0]  %s425, 128, %s10, [#allocation15]
    $region69: #{tpu_custom_call.1} parent=1 // pred_fallthru
      _
    // Predicated region
    $region70: #{tpu_custom_call.1} parent=1 // pred_check
      _
    $region71: #{tpu_custom_call.1} parent=1 // pred_check_branch
      %429 = sbr.rel (0) target = $region73
    $region72: #{tpu_custom_call.1} parent=1 // pred_region
      %s431 = ssub.s32 128, 128
      %432 = vsyncadd [#allocation15], %s431
      %s434 = sshll.u32 [#allocation16], 4
      %s435 = int_to_ptr.vmem [resolvable:$true] %s434
      %437 = dma.vmem_to_hbm [thread:$0]  %s435, 128, %s11, [#allocation15]
    $region73: #{tpu_custom_call.1} parent=1 // pred_fallthru
      _
    // Predicated region
    $region74: #{tpu_custom_call.1} parent=1 // pred_check
      _
    $region75: #{tpu_custom_call.1} parent=1 // pred_check_branch
      %439 = sbr.rel (0) target = $region77
    $region76: #{tpu_custom_call.1} parent=1 // pred_region
      %440 = dma.done [#allocation4], 128
    $region77: #{tpu_custom_call.1} parent=1 // pred_fallthru
      _
    // Predicated region
    $region78: #{tpu_custom_call.1} parent=1 // pred_check
      _
    $region79: #{tpu_custom_call.1} parent=1 // pred_check_branch
      %442 = sbr.rel (0) target = $region81
    $region80: #{tpu_custom_call.1} parent=1 // pred_region
      %443 = dma.done [#allocation15], 128
    $region81: #{tpu_custom_call.1} parent=1 // pred_fallthru
      _
    // Predicated region
    $region82: #{tpu_custom_call.1} parent=1 // pred_check
      _
    $region83: #{tpu_custom_call.1} parent=1 // pred_check_branch
      %445 = sbr.rel (0) target = $region85
    $region84: #{tpu_custom_call.1} parent=1 // pred_region
      %446 = dma.done [#allocation15], 128
    $region85: #{tpu_custom_call.1} parent=1 // pred_fallthru
      _
    %447 = vsyncpa [#allocation3], 1
    %448 = vsyncpa [#allocation6], 1
    %449 = vsyncpa [#allocation9], 1
    %450 = vsyncpa [#allocation12], 1
    %451 = vsyncpa [#allocation4], 1
    %452 = vsyncpa [#allocation15], 1

</llo_original>
